<compile_context>
chip_gen: v5e
topology: v5e:2x2
jax: 0.10.0
libtpu: 0.0.40
codegen_flags: <defaults>
</compile_context>

<pallas_src>
import jax
import jax.numpy as jnp
from jax.experimental import pallas as pl
from jax.experimental.pallas import tpu as pltpu


def _round_up(x: int, m: int) -> int:
    return (x + m - 1) // m * m


def _num_tensorcores() -> int:
    """Best-effort TensorCores-per-chip (v7x=2); falls back to 1."""
    try:
        info = pltpu.get_tpu_info()
        for name in ("num_cores", "core_count", "num_tensorcores",
                     "tensorcore_count"):
            val = getattr(info, name, None)
            if isinstance(val, int) and 0 < val <= 8:
                return val
    except Exception:
        pass
    try:
        val = getattr(jax.devices()[0], "num_cores", None)
        if isinstance(val, int) and 0 < val <= 8:
            return val
    except Exception:
        pass
    return 1


def _embedding_gather_kernel(ids_ref, emb_ref, out_ref):
    """One grid step: gather TQ embedding rows via one-hot matmul.

    ids_ref: (1, TQ) int32  in VMEM (lane-dense)
    emb_ref: (V, H)         embedding table in VMEM (resident every step)
    out_ref: (TQ, H)        output tile
    """
    ids_row = ids_ref[...]                                    # (1, TQ) int32
    tq = ids_row.shape[1]
    v = emb_ref.shape[0]
    # One-hot built lane-major: only a sublane broadcast of ids + iota compare
    # (pure VPU), then a single 2-D XLU transpose to put tokens on sublanes.
    cand = jax.lax.broadcasted_iota(jnp.int32, (v, tq), 0)    # (V, TQ)
    onehot_t = (ids_row == cand).astype(jnp.float32)          # (V, TQ) of {0,1}
    onehot = onehot_t.T                                       # (TQ, V)
    # HIGHEST keeps the 0/1-weighted gather bit-exact (no bf16 rounding of the
    # table operand on the MXU); the kernel is store-bound so it costs nothing.
    acc = jnp.dot(
        onehot,
        emb_ref[...],
        precision=jax.lax.Precision.HIGHEST,
        preferred_element_type=jnp.float32,
    )
    out_ref[...] = acc.astype(out_ref.dtype)


def structural_position_embedding(ids: jax.Array,
                                  emb_table: jax.Array,
                                  *,
                                  tq: int = 8192,
                                  out_dtype=None,
                                  min_pallas_tokens: int = 4096,
                                  vmem_budget_bytes: int = 24 * 2**20
                                  ) -> jax.Array:
    """Pallas equivalent of LongT5StructuralPositionEmbedding.forward.

    ids:       int[B, S]     structural position ids (0 <= id < V)
    emb_table: float[V, H]   embedding weight
    returns:   float[B, S, H]   (out_dtype, default = table dtype, i.e. f32)
    """
    b, s = ids.shape
    v, h = emb_table.shape
    n_tok = b * s

    out_dtype = emb_table.dtype if out_dtype is None else jnp.dtype(out_dtype)
    out_itemsize = jnp.dtype(out_dtype).itemsize
    tbl_itemsize = jnp.dtype(emb_table.dtype).itemsize

    if n_tok == 0:
        return jnp.zeros((b, s, h), dtype=out_dtype)

    ids_i32 = ids.astype(jnp.int32)

    # Tiny problems: kernel launch + pipeline fixed cost dominates; XLA gather
    # is strictly better.  (Out-of-range ids behave differently here: jnp.take
    # clamps, the kernel emits zero rows -- both are UB vs nn.Embedding.)
    if n_tok < min_pallas_tokens:
        return jnp.take(emb_table, ids_i32, axis=0).astype(out_dtype)

    # ---- token-tile selection under a total-resident VMEM budget -----------
    # Per token-row resident bytes: double-buffered output tile, one-hot plus
    # its transpose (f32), f32 accumulator slack, double-buffered ids (lane-
    # dense: 4 B/token, not 512 B as with a (TQ,1) block).
    per_row = (2 * h * out_itemsize) + (2 * v * 4) + (h * 4) + (2 * 4)
    table_bytes = 2 * v * h * tbl_itemsize               # double-buffered
    budget = max(2 * 2**20, vmem_budget_bytes - table_bytes - (1 << 20))
    tq_cap = max(128, (budget // per_row) // 128 * 128)
    tq_req = max(128, (tq // 128) * 128) if tq >= 128 else 128
    tq_eff = min(tq_req, tq_cap)

    if n_tok <= tq_eff:
        # Single exact block (block == full array dims): legal for any n_tok,
        # no raggedness, no ids padding.
        tq_eff = n_tok
    n_blocks = pl.cdiv(n_tok, tq_eff)

    # v7x (2 TensorCores): prefer an even block count so the "parallel" grid
    # axis splits evenly across cores.  No-op on 1-TC chips (v5e/v6e).
    if n_blocks > 1 and n_blocks % 2 == 1 and _num_tensorcores() >= 2:
        tq_even = _round_up(pl.cdiv(n_tok, n_blocks + 1), 128)
        if tq_even >= 512:
            tq_eff = tq_even
            n_blocks = pl.cdiv(n_tok, tq_eff)

    # ---- ids: lane-dense (1, n_pad) int32 ----------------------------------
    # Padding ids is ~4 B/token (negligible vs the 512 B/token output) and
    # keeps every ids block exact.  The OUTPUT is not padded: the last block's
    # rows >= n_tok are dropped by the ragged-block store, so there is no
    # post-kernel slice / extra HBM pass.
    n_pad = n_blocks * tq_eff
    ids_flat = ids_i32.reshape(n_tok)
    if n_pad != n_tok:
        ids_flat = jnp.pad(ids_flat, (0, n_pad - n_tok))
    ids_flat = ids_flat.reshape(1, n_pad)

    vmem_need = tq_eff * per_row + table_bytes + (2 << 20)
    vmem_limit = int(min(48 * 2**20, max(16 * 2**20, int(vmem_need * 1.5))))

    cost = pl.CostEstimate(
        flops=2 * n_pad * v * h,
        transcendentals=0,
        bytes_accessed=(n_tok * h * out_itemsize      # output stores
                        + n_pad * 4                   # ids reads
                        + v * h * tbl_itemsize),      # table (resident)
    )

    out = pl.pallas_call(
        _embedding_gather_kernel,
        out_shape=jax.ShapeDtypeStruct((n_tok, h), out_dtype),
        grid_spec=pltpu.PrefetchScalarGridSpec(
            num_scalar_prefetch=0,
            grid=(n_blocks,),
            in_specs=[
                # lane-dense ids row tile
                pl.BlockSpec((1, tq_eff), lambda i: (0, i)),
                # full embedding table, constant block index -> DMA'd once,
                # stays resident across all grid steps
                pl.BlockSpec((v, h), lambda i: (0, 0)),
            ],
            out_specs=pl.BlockSpec((tq_eff, h), lambda i: (i, 0)),
        ),
        compiler_params=pltpu.CompilerParams(
            dimension_semantics=("parallel",),
            vmem_limit_bytes=vmem_limit,
        ),
        cost_estimate=cost,
    )(ids_flat, emb_table)

    return out.reshape(b, s, h)


if __name__ == "__main__":
    # --- deterministic "config" consistent with the module's __init__ -------
    # position_embeddings.mode = 'node_depths', max_depth = 15 -> V = 16
    # hidden_dim = 128, init_std = 0.02
    max_depth = 15
    num_position_embeddings = max_depth + 1          # get_num_position_embeddings
    hidden_dim = 128
    init_std = 0.02

    key = jax.random.PRNGKey(0)
    k_w, k1, k2, k3 = jax.random.split(key, 4)

    # nn.Embedding.weight.data.normal_(0, init_std)
    emb_table = (init_std *
                 jax.random.normal(k_w, (num_position_embeddings, hidden_dim),
                                   dtype=jnp.float32))

    def ref(x):
        return jnp.take(emb_table, x, axis=0)

    # --- case 1: tiny module-sized shape, forced through the kernel ---------
    ids_small = jax.random.randint(k1, (2, 8), 0, num_position_embeddings,
                                   dtype=jnp.int32)
    out_small = jax.block_until_ready(
        structural_position_embedding(ids_small, emb_table, min_pallas_tokens=0))
    assert out_small.shape == (2, 8, hidden_dim), out_small.shape
    assert out_small.dtype == jnp.float32
    assert jnp.allclose(out_small, ref(ids_small), atol=1e-6, rtol=1e-6), \
        float(jnp.max(jnp.abs(out_small - ref(ids_small))))

    # also exercise the tiny-shape fast path (bypasses the kernel)
    out_fast = jax.block_until_ready(
        structural_position_embedding(ids_small, emb_table))
    assert jnp.allclose(out_fast, ref(ids_small), atol=1e-6, rtol=1e-6)

    # --- case 2: several grid steps + ragged (un-padded) last output block --
    ids_mid = jax.random.randint(k2, (4, 500), 0, num_position_embeddings,
                                 dtype=jnp.int32)    # 2000 tokens, tq=256 -> 8 blocks
    out_mid = jax.block_until_ready(
        structural_position_embedding(ids_mid, emb_table, tq=256,
                                      min_pallas_tokens=0))
    assert out_mid.shape == (4, 500, hidden_dim), out_mid.shape
    assert jnp.allclose(out_mid, ref(ids_mid), atol=1e-6, rtol=1e-6), \
        float(jnp.max(jnp.abs(out_mid - ref(ids_mid))))

    # --- case 3: default big tile (8192), 2 grid steps, ragged last block ---
    ids_big = jax.random.randint(k3, (3, 3000), 0, num_position_embeddings,
                                 dtype=jnp.int32)    # 9000 tokens
    out_big = jax.block_until_ready(
        structural_position_embedding(ids_big, emb_table, min_pallas_tokens=0))
    assert out_big.shape == (3, 3000, hidden_dim), out_big.shape
    assert jnp.allclose(out_big, ref(ids_big), atol=1e-6, rtol=1e-6), \
        float(jnp.max(jnp.abs(out_big - ref(ids_big))))

    print("KERNEL_OK")
</pallas_src>

<mosaic_0001>
module attributes {stable_mosaic.version = 11 : i64} {
  func.func @_embedding_gather_kernel(%arg0: i32, %arg1: memref<1x16xi32, #tpu.memory_space<vmem>>, %arg2: memref<16x128xf32, #tpu.memory_space<vmem>>, %arg3: memref<16x128xf32, #tpu.memory_space<vmem>>) attributes {dimension_semantics = [#tpu.dimension_semantics<parallel>], iteration_bounds = array<i64: 1>, scalar_prefetch = 0 : i64, scratch_operands = 0 : i64, tpu.core_type = #tpu.core_type<tc>, window_params = [{transform_indices = @transform_0, window_bounds = array<i64: 1, 16>}, {pipeline_mode = #tpu.pipeline_mode<synchronous>, transform_indices = @transform_1, window_bounds = array<i64: 16, 128>}, {transform_indices = @transform_2, window_bounds = array<i64: 16, 128>}]} {
    %c0 = arith.constant 0 : index
    %c0_0 = arith.constant 0 : index
    %0 = vector.load %arg1[%c0, %c0_0] : memref<1x16xi32, #tpu.memory_space<vmem>>, vector<1x16xi32>
    %1 = tpu.iota {dimensions = array<i32: 0>} : vector<16x16xi32>
    %2 = vector.broadcast %0 : vector<1x16xi32> to vector<16x16xi32>
    %3 = arith.cmpi eq, %2, %1 : vector<16x16xi32>
    %4 = arith.extui %3 : vector<16x16xi1> to vector<16x16xi32>
    %5 = arith.sitofp %4 : vector<16x16xi32> to vector<16x16xf32>
    %6 = tpu.transpose %5, [1, 0] : vector<16x16xf32> -> vector<16x16xf32>
    %c0_1 = arith.constant 0 : index
    %c0_2 = arith.constant 0 : index
    %7 = vector.load %arg2[%c0_1, %c0_2] : memref<16x128xf32, #tpu.memory_space<vmem>>, vector<16x128xf32>
    %cst = arith.constant dense<0.000000e+00> : vector<16x128xf32>
    %8 = tpu.matmul %6, %7, %cst {dimension_numbers = #tpu.dot_dimension_numbers<[1], [0], [0], [1], [0, 0, 1, 1], [], []>, precision = #tpu.contract_precision<fp32>} : vector<16x16xf32>, vector<16x128xf32>, vector<16x128xf32> -> vector<16x128xf32>
    %c0_3 = arith.constant 0 : index
    %c0_4 = arith.constant 0 : index
    %9 = vector.load %arg3[%c0_3, %c0_4] : memref<16x128xf32, #tpu.memory_space<vmem>>, vector<16x128xf32>
    tpu.vector_store %arg3[%c0_3, %c0_4], %8 {strides = array<i32>} : memref<16x128xf32, #tpu.memory_space<vmem>>, vector<16x128xf32>,
    return
  }
  func.func @transform_0(%arg0: i32) -> (i32, i32) {
    %c0_i32 = arith.constant 0 : i32
    %c0_i32_0 = arith.constant 0 : i32
    return %c0_i32, %arg0 : i32, i32
  }
  func.func @transform_1(%arg0: i32) -> (i32, i32) {
    %c0_i32 = arith.constant 0 : i32
    %c0_i32_0 = arith.constant 0 : i32
    %c0_i32_1 = arith.constant 0 : i32
    return %c0_i32, %c0_i32_0 : i32, i32
  }
  func.func @transform_2(%arg0: i32) -> (i32, i32) {
    %c0_i32 = arith.constant 0 : i32
    %c0_i32_0 = arith.constant 0 : i32
    return %arg0, %c0_i32 : i32, i32
  }
}

</mosaic_0001>

<llo_original>
// kernel: tpu_custom_call.1
$region0: #{tpu_custom_call.1}
  #allocation0 [shape = 'u32[]', space=smem, size = 0x4, offset = 0x4, fixed_abs, tag = 'smem constant byte address 0x4 - core index']
  #allocation1 [shape = 'u32[72,128]{1,0:T(1,128)}', space=vmem, size = 0x9000, scoped, tag = 'internal scratch']
  %s0 = inlined_call_operand.hbm [shape: s32[1,16], index: 0, kind: input, shape index: {}]
  %s1 = inlined_call_operand.hbm [shape: f32[16,128], index: 1, kind: input, shape index: {}]
  %s2 = inlined_call_operand.hbm [shape: f32[16,128], index: 2, kind: output, shape index: {}]
  %s3 = sld [smem:[#allocation0]]
  $region26: #{tpu_custom_call.1} parent=0
    _
  %s5 = ssub.s32 1, %s3
  %s6 = scalar_select 0, %s5, %s3
  $region1: #{tpu_custom_call.1} parent=0
    #allocation2 [shape = 'u8[512]{0}', space=vmem, size = 0x400, scoped, tag = 'input window, operand 0, single buffered']
    #allocation3 [shape = 's32[1]{0}', space=sflag, size = 0x4, scoped, tag = 'scoped memory for tpu_custom_call.1']
    #allocation4 [shape = 's32[1]{0}', space=sflag, size = 0x4, scoped, tag = 'scoped memory for tpu_custom_call.1']
    #allocation5 [shape = 'u8[8192]{0}', space=vmem, size = 0x2000, scoped, tag = 'input window, operand 1, single buffered']
    #allocation6 [shape = 's32[1]{0}', space=sflag, size = 0x4, scoped, tag = 'scoped memory for tpu_custom_call.1']
    #allocation7 [shape = 'u8[8192]{0}', space=vmem, size = 0x2000, scoped, tag = 'output window, operand 0, single buffered']
    %7 = vsyncpa [#allocation3], 0
    %8 = vsyncpa [#allocation6], 0
    %9 = vsyncpa [#allocation4], 0
    // Predicated region
    $region2: #{tpu_custom_call.1} parent=1 // pred_check
      _
    $region3: #{tpu_custom_call.1} parent=1 // pred_check_branch
      %11 = sbr.rel (0) target = $region5
    $region4: #{tpu_custom_call.1} parent=1 // pred_region
      %13 = vsyncadd [#allocation3], 0
      %s15 = sshll.u32 %s0, 4
      %s16 = int_to_ptr.hbm [resolvable:$true] %s15
      %s17 = sshll.u32 [#allocation2], 4
      %s18 = int_to_ptr.vmem [resolvable:$true] %s17
      %20 = dma.hbm_to_vmem [thread:$0]  %s16, 16, %s18, [#allocation3]
    $region5: #{tpu_custom_call.1} parent=1 // pred_fallthru
      _
    // Predicated region
    $region6: #{tpu_custom_call.1} parent=1 // pred_check
      _
    $region7: #{tpu_custom_call.1} parent=1 // pred_check_branch
      %22 = sbr.rel (0) target = $region9
    $region8: #{tpu_custom_call.1} parent=1 // pred_region
      %24 = vsyncadd [#allocation6], 0
      %s25 = sshll.u32 %s1, 4
      %s26 = int_to_ptr.hbm [resolvable:$true] %s25
      %s27 = sshll.u32 [#allocation5], 4
      %s28 = int_to_ptr.vmem [resolvable:$true] %s27
      %33 = dma.hbm_to_vmem [thread:$0]  %s26, 256, %s28, [#allocation6], 128, 128, 8
    $region9: #{tpu_custom_call.1} parent=1 // pred_fallthru
      _
    // Predicated region
    $region10: #{tpu_custom_call.1} parent=1 // pred_check
      _
    $region11: #{tpu_custom_call.1} parent=1 // pred_check_branch
      %35 = sbr.rel (0) target = $region13
    $region12: #{tpu_custom_call.1} parent=1 // pred_region
      %37 = dma.done [#allocation3], 16
    $region13: #{tpu_custom_call.1} parent=1 // pred_fallthru
      _
    // Predicated region
    $region14: #{tpu_custom_call.1} parent=1 // pred_check
      _
    $region15: #{tpu_custom_call.1} parent=1 // pred_check_branch
      %39 = sbr.rel (0) target = $region17
    $region16: #{tpu_custom_call.1} parent=1 // pred_region
      %41 = dma.done [#allocation6], 256
    $region17: #{tpu_custom_call.1} parent=1 // pred_fallthru
      _
    %v42 = vld [vmem:[#allocation2] sm:$0x1]
    %v43 = vlaneseq
    %v44 = vshrl.u32 %v43, 7
    %v45 = vadd.s32 %v44, 8
    %v46 = vperm.slane %v42, 0
    %vm47 = vcmp.eq.s32.totalorder %v46, %v44
    %vm48 = vcmp.eq.s32.totalorder %v46, %v45
    %v49 = vsel %vm47, 1, 0
    %v50 = vsel %vm48, 1, 0
    %v51 = vcvt.s32.f32 %v49
    %v52 = vcvt.s32.f32 %v50
    %53 = vxpose.xlu0.b32.start [1/16] %v51, 128
    %54 = vxpose.xlu0.b32.cont [2/16] %v52, 128
    %55 = vxpose.xlu0.b32.cont [3/16] 0.0, 128
    %56 = vxpose.xlu0.b32.cont [4/16] 0.0, 128
    %57 = vxpose.xlu0.b32.cont [5/16] 0.0, 128
    %58 = vxpose.xlu0.b32.cont [6/16] 0.0, 128
    %59 = vxpose.xlu0.b32.cont [7/16] 0.0, 128
    %60 = vxpose.xlu0.b32.cont [8/16] 0.0, 128
    %61 = vxpose.xlu0.b32.cont [9/16] 0.0, 128
    %62 = vxpose.xlu0.b32.cont [10/16] 0.0, 128
    %63 = vxpose.xlu0.b32.cont [11/16] 0.0, 128
    %64 = vxpose.xlu0.b32.cont [12/16] 0.0, 128
    %65 = vxpose.xlu0.b32.cont [13/16] 0.0, 128
    %66 = vxpose.xlu0.b32.cont [14/16] 0.0, 128
    %67 = vxpose.xlu0.b32.cont [15/16] 0.0, 128
    %68 = vxpose.xlu0.b32.end [16/16] 0.0, 128
    %v69 = vpop.trf.xlu0
    %v70 = vpop.trf.xlu0
    %v71 = vpop.trf.xlu0
    %v72 = vpop.trf.xlu0
    %v73 = vpop.trf.xlu0
    %v74 = vpop.trf.xlu0
    %v75 = vpop.trf.xlu0
    %v76 = vpop.trf.xlu0
    %v77 = vpop.trf.xlu0
    %v78 = vpop.trf.xlu0
    %v79 = vpop.trf.xlu0
    %v80 = vpop.trf.xlu0
    %v81 = vpop.trf.xlu0
    %v82 = vpop.trf.xlu0
    %v83 = vpop.trf.xlu0
    %v84 = vpop.trf.xlu0
    %v85 = vld [vmem:[#allocation5] sm:$0xff]
    %v86 = vld [vmem:[#allocation5 + $0x8] sm:$0xff]
    %vm87 = vcmask 130048
    %v89 = vsel %vm87, %v69, 0
    %v92 = vsel %vm87, %v70, 0
    %94 = vmatpush.msra.mxu0 0.0
    %95 = vmatpush.msra.mxu0 0.0
    %96 = vmatpush.msra.mxu0 0.0
    %97 = vmatpush.msra.mxu0 0.0
    %98 = vmatpush.msra.mxu0 0.0
    %99 = vmatpush.msra.mxu0 0.0
    %100 = vmatpush.msra.mxu0 0.0
    %101 = vmatpush.msra.mxu0 0.0
    %102 = vmatpush.msra.mxu0 0.0
    %103 = vmatpush.msra.mxu0 0.0
    %104 = vmatpush.msra.mxu0 0.0
    %105 = vmatpush.msra.mxu0 0.0
    %106 = vmatpush.msra.mxu0 0.0
    %107 = vmatpush.msra.mxu0 0.0
    %v108 = vand.u32 %v86, 4294901760
    %109 = vmatpush.msra.mxu0 %v108
    %v110 = vand.u32 %v85, 4294901760
    %111 = vmatpush.msra.mxu0 %v110
    %v112 = vand.u32 %v89, 4294901760
    %v113 = vsub.f32 %v89, %v112
    %v114 = vand.u32 %v113, 4294901760
    %v115 = vsub.f32 %v113, %v114
    %v116 = vand.u32 %v115, 4294901760
    %117 = vmatmul.f32.gmra.mxu0 %v116
    %v118 = vpop.f32.mrf.mxu0
    %v119 = vadd.f32 0.0, %v118
    %v120 = vand.u32 %v92, 4294901760
    %v121 = vsub.f32 %v92, %v120
    %v122 = vand.u32 %v121, 4294901760
    %v123 = vsub.f32 %v121, %v122
    %v124 = vand.u32 %v123, 4294901760
    %125 = vmatmul.f32.gmra.mxu0 %v124
    %v126 = vpop.f32.mrf.mxu0
    %v127 = vadd.f32 0.0, %v126
    %128 = vdwg.mxu0
    %129 = vmatpush.msra.mxu0 0.0
    %130 = vmatpush.msra.mxu0 0.0
    %131 = vmatpush.msra.mxu0 0.0
    %132 = vmatpush.msra.mxu0 0.0
    %133 = vmatpush.msra.mxu0 0.0
    %134 = vmatpush.msra.mxu0 0.0
    %135 = vmatpush.msra.mxu0 0.0
    %136 = vmatpush.msra.mxu0 0.0
    %137 = vmatpush.msra.mxu0 0.0
    %138 = vmatpush.msra.mxu0 0.0
    %139 = vmatpush.msra.mxu0 0.0
    %140 = vmatpush.msra.mxu0 0.0
    %141 = vmatpush.msra.mxu0 0.0
    %142 = vmatpush.msra.mxu0 0.0
    %v143 = vand.u32 %v86, 4294901760
    %v144 = vsub.f32 %v86, %v143
    %v145 = vand.u32 %v144, 4294901760
    %v146 = vsub.f32 %v144, %v145
    %v147 = vand.u32 %v146, 4294901760
    %148 = vmatpush.msra.mxu0 %v147
    %v149 = vand.u32 %v85, 4294901760
    %v150 = vsub.f32 %v85, %v149
    %v151 = vand.u32 %v150, 4294901760
    %v152 = vsub.f32 %v150, %v151
    %v153 = vand.u32 %v152, 4294901760
    %154 = vmatpush.msra.mxu0 %v153
    %v155 = vand.u32 %v89, 4294901760
    %156 = vmatmul.f32.gmra.mxu0 %v155
    %v157 = vpop.f32.mrf.mxu0
    %v158 = vadd.f32 %v119, %v157
    %v159 = vand.u32 %v92, 4294901760
    %160 = vmatmul.f32.gmra.mxu0 %v159
    %v161 = vpop.f32.mrf.mxu0
    %v162 = vadd.f32 %v127, %v161
    %163 = vdwg.mxu0
    %164 = vmatpush.msra.mxu0 0.0
    %165 = vmatpush.msra.mxu0 0.0
    %166 = vmatpush.msra.mxu0 0.0
    %167 = vmatpush.msra.mxu0 0.0
    %168 = vmatpush.msra.mxu0 0.0
    %169 = vmatpush.msra.mxu0 0.0
    %170 = vmatpush.msra.mxu0 0.0
    %171 = vmatpush.msra.mxu0 0.0
    %172 = vmatpush.msra.mxu0 0.0
    %173 = vmatpush.msra.mxu0 0.0
    %174 = vmatpush.msra.mxu0 0.0
    %175 = vmatpush.msra.mxu0 0.0
    %176 = vmatpush.msra.mxu0 0.0
    %177 = vmatpush.msra.mxu0 0.0
    %v178 = vand.u32 %v86, 4294901760
    %v179 = vsub.f32 %v86, %v178
    %180 = vmatpush.msra.mxu0 %v179
    %v181 = vand.u32 %v85, 4294901760
    %v182 = vsub.f32 %v85, %v181
    %183 = vmatpush.msra.mxu0 %v182
    %v184 = vand.u32 %v89, 4294901760
    %v185 = vsub.f32 %v89, %v184
    %186 = vmatmul.f32.gmra.mxu0 %v185
    %v187 = vpop.f32.mrf.mxu0
    %v188 = vadd.f32 %v158, %v187
    %v189 = vand.u32 %v92, 4294901760
    %v190 = vsub.f32 %v92, %v189
    %191 = vmatmul.f32.gmra.mxu0 %v190
    %v192 = vpop.f32.mrf.mxu0
    %v193 = vadd.f32 %v162, %v192
    %194 = vdwg.mxu0
    %195 = vmatpush.msra.mxu0 0.0
    %196 = vmatpush.msra.mxu0 0.0
    %197 = vmatpush.msra.mxu0 0.0
    %198 = vmatpush.msra.mxu0 0.0
    %199 = vmatpush.msra.mxu0 0.0
    %200 = vmatpush.msra.mxu0 0.0
    %201 = vmatpush.msra.mxu0 0.0
    %202 = vmatpush.msra.mxu0 0.0
    %203 = vmatpush.msra.mxu0 0.0
    %204 = vmatpush.msra.mxu0 0.0
    %205 = vmatpush.msra.mxu0 0.0
    %206 = vmatpush.msra.mxu0 0.0
    %207 = vmatpush.msra.mxu0 0.0
    %208 = vmatpush.msra.mxu0 0.0
    %v209 = vand.u32 %v86, 4294901760
    %210 = vmatpush.msra.mxu0 %v209
    %v211 = vand.u32 %v85, 4294901760
    %212 = vmatpush.msra.mxu0 %v211
    %v213 = vand.u32 %v89, 4294901760
    %v214 = vsub.f32 %v89, %v213
    %v215 = vand.u32 %v214, 4294901760
    %216 = vmatmul.f32.gmra.mxu0 %v215
    %v217 = vpop.f32.mrf.mxu0
    %v218 = vadd.f32 %v188, %v217
    %v219 = vand.u32 %v92, 4294901760
    %v220 = vsub.f32 %v92, %v219
    %v221 = vand.u32 %v220, 4294901760
    %222 = vmatmul.f32.gmra.mxu0 %v221
    %v223 = vpop.f32.mrf.mxu0
    %v224 = vadd.f32 %v193, %v223
    %225 = vdwg.mxu0
    %226 = vmatpush.msra.mxu0 0.0
    %227 = vmatpush.msra.mxu0 0.0
    %228 = vmatpush.msra.mxu0 0.0
    %229 = vmatpush.msra.mxu0 0.0
    %230 = vmatpush.msra.mxu0 0.0
    %231 = vmatpush.msra.mxu0 0.0
    %232 = vmatpush.msra.mxu0 0.0
    %233 = vmatpush.msra.mxu0 0.0
    %234 = vmatpush.msra.mxu0 0.0
    %235 = vmatpush.msra.mxu0 0.0
    %236 = vmatpush.msra.mxu0 0.0
    %237 = vmatpush.msra.mxu0 0.0
    %238 = vmatpush.msra.mxu0 0.0
    %239 = vmatpush.msra.mxu0 0.0
    %v240 = vand.u32 %v86, 4294901760
    %v241 = vsub.f32 %v86, %v240
    %v242 = vand.u32 %v241, 4294901760
    %243 = vmatpush.msra.mxu0 %v242
    %v244 = vand.u32 %v85, 4294901760
    %v245 = vsub.f32 %v85, %v244
    %v246 = vand.u32 %v245, 4294901760
    %247 = vmatpush.msra.mxu0 %v246
    %v248 = vand.u32 %v89, 4294901760
    %249 = vmatmul.f32.gmra.mxu0 %v248
    %v250 = vpop.f32.mrf.mxu0
    %v251 = vadd.f32 %v218, %v250
    %v252 = vand.u32 %v92, 4294901760
    %253 = vmatmul.f32.gmra.mxu0 %v252
    %v254 = vpop.f32.mrf.mxu0
    %v255 = vadd.f32 %v224, %v254
    %256 = vdwg.mxu0
    %257 = vmatpush.msra.mxu0 0.0
    %258 = vmatpush.msra.mxu0 0.0
    %259 = vmatpush.msra.mxu0 0.0
    %260 = vmatpush.msra.mxu0 0.0
    %261 = vmatpush.msra.mxu0 0.0
    %262 = vmatpush.msra.mxu0 0.0
    %263 = vmatpush.msra.mxu0 0.0
    %264 = vmatpush.msra.mxu0 0.0
    %265 = vmatpush.msra.mxu0 0.0
    %266 = vmatpush.msra.mxu0 0.0
    %267 = vmatpush.msra.mxu0 0.0
    %268 = vmatpush.msra.mxu0 0.0
    %269 = vmatpush.msra.mxu0 0.0
    %270 = vmatpush.msra.mxu0 0.0
    %v271 = vand.u32 %v86, 4294901760
    %272 = vmatpush.msra.mxu0 %v271
    %v273 = vand.u32 %v85, 4294901760
    %274 = vmatpush.msra.mxu0 %v273
    %v275 = vand.u32 %v89, 4294901760
    %276 = vmatmul.f32.gmra.mxu0 %v275
    %v277 = vpop.f32.mrf.mxu0
    %v278 = vadd.f32 %v251, %v277
    %v279 = vand.u32 %v92, 4294901760
    %280 = vmatmul.f32.gmra.mxu0 %v279
    %v281 = vpop.f32.mrf.mxu0
    %v282 = vadd.f32 %v255, %v281
    %283 = vdwg.mxu0
    %284 = vst [vmem:[#allocation7] sm:$0xff] %v278
    %285 = vst [vmem:[#allocation7 + $0x8] sm:$0xff] %v282
    // Predicated region
    $region18: #{tpu_custom_call.1} parent=1 // pred_check
      _
    $region19: #{tpu_custom_call.1} parent=1 // pred_check_branch
      %287 = sbr.rel (0) target = $region21
    $region20: #{tpu_custom_call.1} parent=1 // pred_region
      %289 = vsyncadd [#allocation4], 0
      %s290 = sshll.u32 [#allocation7], 4
      %s291 = int_to_ptr.vmem [resolvable:$true] %s290
      %s292 = sshll.u32 %s2, 4
      %s293 = int_to_ptr.hbm [resolvable:$true] %s292
      %298 = dma.vmem_to_hbm [thread:$0]  %s291, 256, %s293, [#allocation4], 128, 128, 8
    $region21: #{tpu_custom_call.1} parent=1 // pred_fallthru
      _
    // Predicated region
    $region22: #{tpu_custom_call.1} parent=1 // pred_check
      _
    $region23: #{tpu_custom_call.1} parent=1 // pred_check_branch
      %300 = sbr.rel (0) target = $region25
    $region24: #{tpu_custom_call.1} parent=1 // pred_region
      %302 = dma.done [#allocation4], 256
    $region25: #{tpu_custom_call.1} parent=1 // pred_fallthru
      _
    %303 = vsyncpa [#allocation3], 1
    %304 = vsyncpa [#allocation6], 1
    %305 = vsyncpa [#allocation4], 1

</llo_original>
